<compile_context>
chip_gen: v7x
topology: tpu7x:2x2x1
jax: 0.10.0
libtpu: 0.0.40
codegen_flags: <defaults>
</compile_context>

<pallas_src>
import jax
import jax.numpy as jnp
from jax import lax
from jax.experimental import pallas as pl
from jax.experimental.pallas import tpu as pltpu


def _round_up(x, m):
    return ((x + m - 1) // m) * m


def _edge_embed_kernel(ix_ref, iy_ref, tabx_ref, taby_ref, out_ref):
    tile_e, out_pad = out_ref.shape
    num_x, emb_x = tabx_ref.shape
    num_y, emb_y = taby_ref.shape

    ids_x = ix_ref[...]                       # [tile_e, 1] int32
    ids_y = iy_ref[...]                       # [tile_e, 1] int32

    # One-hot gather: tiny-K MXU matmuls (K = vocab size).  OOB id -> zero row.
    onehot_x = (ids_x == lax.broadcasted_iota(jnp.int32, (tile_e, num_x), 1)
                ).astype(tabx_ref.dtype)
    onehot_y = (ids_y == lax.broadcasted_iota(jnp.int32, (tile_e, num_y), 1)
                ).astype(taby_ref.dtype)

    rows_x = jnp.dot(onehot_x, tabx_ref[...], preferred_element_type=jnp.float32)
    rows_y = jnp.dot(onehot_y, taby_ref[...], preferred_element_type=jnp.float32)

    pieces = [rows_x.astype(out_ref.dtype), rows_y.astype(out_ref.dtype)]
    pad = out_pad - (emb_x + emb_y)           # static Python int at trace time
    if pad > 0:
        pieces.append(jnp.zeros((tile_e, pad), out_ref.dtype))
    # Single lane-dense store of the whole [tile_e, out_pad] tile.
    out_ref[...] = jnp.concatenate(pieces, axis=-1)


def edge_feature_embedding(edge_attr, emb_table_x, emb_table_y, *, tile_e=512):
    """edge_attr: int [E, 2]; tables: [num_x, emb_x], [num_y, emb_y].

    Returns concat(embedding_x(edge_attr[:,0]), embedding_y(edge_attr[:,1]))
    of shape [E, emb_x + emb_y].
    """
    E = edge_attr.shape[0]
    num_x, emb_x = emb_table_x.shape
    num_y, emb_y = emb_table_y.shape
    out_dim = emb_x + emb_y
    out_dtype = emb_table_x.dtype

    if E == 0:                                # degenerate-grid guard
        return jnp.zeros((0, out_dim), out_dtype)

    # Lane-dense output: pad feature dim to a multiple of 128, slice back below.
    out_pad = _round_up(out_dim, 128)

    # >= 2 edge tiles so v7x's second TensorCore has work; tile_e multiple of 8.
    tile_e = max(8, min(tile_e, _round_up(pl.cdiv(E, 2), 8)))
    e_pad = _round_up(E, tile_e)
    num_tiles = e_pad // tile_e

    # Indices as tiled VMEM inputs (column-shaped so any tile_e multiple of 8
    # is a legal block).  Padded tail rows use id 0 and are sliced off below.
    ix = jnp.zeros((e_pad, 1), jnp.int32).at[:E, 0].set(
        edge_attr[:, 0].astype(jnp.int32))
    iy = jnp.zeros((e_pad, 1), jnp.int32).at[:E, 0].set(
        edge_attr[:, 1].astype(jnp.int32))

    # Explicit scoped-VMEM budget: resident tables (double-buffer worst case)
    # + double-buffered index/output tiles, with headroom.
    itemsize = jnp.dtype(out_dtype).itemsize
    table_bytes = 2 * (num_x * emb_x + num_y * emb_y) * itemsize
    io_bytes = 2 * (tile_e * out_pad * itemsize + 2 * tile_e * 4)
    vmem_limit = int(min(max(2 * (table_bytes + io_bytes) + (4 << 20), 32 << 20),
                         100 << 20))

    out = pl.pallas_call(
        _edge_embed_kernel,
        out_shape=jax.ShapeDtypeStruct((e_pad, out_pad), out_dtype),
        grid_spec=pltpu.PrefetchScalarGridSpec(
            num_scalar_prefetch=0,
            grid=(num_tiles,),
            in_specs=[
                pl.BlockSpec((tile_e, 1), lambda i: (i, 0)),
                pl.BlockSpec((tile_e, 1), lambda i: (i, 0)),
                # Full tables, constant block index -> DMA'd once, stay resident.
                # TODO(synk): for vocabularies too large for VMEM, switch these
                # to memory_space=pl.ANY + a manual per-tile DMA row gather.
                pl.BlockSpec((num_x, emb_x), lambda i: (0, 0)),
                pl.BlockSpec((num_y, emb_y), lambda i: (0, 0)),
            ],
            out_specs=pl.BlockSpec((tile_e, out_pad), lambda i: (i, 0)),
        ),
        compiler_params=pltpu.CompilerParams(
            dimension_semantics=("parallel",),   # edge tiles are independent
            vmem_limit_bytes=vmem_limit),
    )(ix, iy, emb_table_x, emb_table_y)

    return out[:E, :out_dim]


def _reference(edge_attr, emb_table_x, emb_table_y):
    return jnp.concatenate(
        [emb_table_x[edge_attr[:, 0]], emb_table_y[edge_attr[:, 1]]], axis=-1)


if __name__ == "__main__":
    num_x, num_y = 16, 8
    emb_x, emb_y = 64, 64     # concat width = 128 -> lane-dense output
    E = 256

    key = jax.random.PRNGKey(0)
    k_tx, k_ty, k_ix, k_iy = jax.random.split(key, 4)
    table_x = jax.random.normal(k_tx, (num_x, emb_x), dtype=jnp.float32)
    table_y = jax.random.normal(k_ty, (num_y, emb_y), dtype=jnp.float32)
    ids_x = jax.random.randint(k_ix, (E,), 0, num_x, dtype=jnp.int32)
    ids_y = jax.random.randint(k_iy, (E,), 0, num_y, dtype=jnp.int32)
    edge_attr = jnp.stack([ids_x, ids_y], axis=1)   # [E, 2] integer edge attrs

    out = edge_feature_embedding(edge_attr, table_x, table_y)
    out = jax.block_until_ready(out)

    ref = _reference(edge_attr, table_x, table_y)
    assert out.shape == (E, emb_x + emb_y)
    # One-hot-times-table gather; tolerance covers any reduced-precision MXU
    # pass on f32 inputs (wrong-row gathers would differ by O(1), far above).
    assert jnp.allclose(out, ref, rtol=5e-2, atol=5e-2), (out, ref)

    print("KERNEL_OK")
</pallas_src>

<mosaic_0001>
module attributes {stable_mosaic.version = 11 : i64} {
  func.func @_edge_embed_kernel(%arg0: i32, %arg1: memref<128x1xi32, #tpu.memory_space<vmem>>, %arg2: memref<128x1xi32, #tpu.memory_space<vmem>>, %arg3: memref<16x64xf32, #tpu.memory_space<vmem>>, %arg4: memref<8x64xf32, #tpu.memory_space<vmem>>, %arg5: memref<128x128xf32, #tpu.memory_space<vmem>>) attributes {dimension_semantics = [#tpu.dimension_semantics<parallel>], iteration_bounds = array<i64: 2>, scalar_prefetch = 0 : i64, scratch_operands = 0 : i64, tpu.core_type = #tpu.core_type<tc>, window_params = [{transform_indices = @transform_0, window_bounds = array<i64: 128, 1>}, {transform_indices = @transform_1, window_bounds = array<i64: 128, 1>}, {pipeline_mode = #tpu.pipeline_mode<synchronous>, transform_indices = @transform_2, window_bounds = array<i64: 16, 64>}, {pipeline_mode = #tpu.pipeline_mode<synchronous>, transform_indices = @transform_3, window_bounds = array<i64: 8, 64>}, {transform_indices = @transform_4, window_bounds = array<i64: 128, 128>}]} {
    %c0 = arith.constant 0 : index
    %c0_0 = arith.constant 0 : index
    %0 = vector.load %arg1[%c0, %c0_0] : memref<128x1xi32, #tpu.memory_space<vmem>>, vector<128x1xi32>
    %c0_1 = arith.constant 0 : index
    %c0_2 = arith.constant 0 : index
    %1 = vector.load %arg2[%c0_1, %c0_2] : memref<128x1xi32, #tpu.memory_space<vmem>>, vector<128x1xi32>
    %2 = tpu.iota {dimensions = array<i32: 1>} : vector<128x16xi32>
    %3 = vector.broadcast %0 : vector<128x1xi32> to vector<128x16xi32>
    %4 = arith.cmpi eq, %3, %2 : vector<128x16xi32>
    %5 = arith.extui %4 : vector<128x16xi1> to vector<128x16xi32>
    %6 = arith.sitofp %5 : vector<128x16xi32> to vector<128x16xf32>
    %7 = tpu.iota {dimensions = array<i32: 1>} : vector<128x8xi32>
    %8 = vector.broadcast %1 : vector<128x1xi32> to vector<128x8xi32>
    %9 = arith.cmpi eq, %8, %7 : vector<128x8xi32>
    %10 = arith.extui %9 : vector<128x8xi1> to vector<128x8xi32>
    %11 = arith.sitofp %10 : vector<128x8xi32> to vector<128x8xf32>
    %c0_3 = arith.constant 0 : index
    %c0_4 = arith.constant 0 : index
    %12 = vector.load %arg3[%c0_3, %c0_4] : memref<16x64xf32, #tpu.memory_space<vmem>>, vector<16x64xf32>
    %cst = arith.constant dense<0.000000e+00> : vector<128x64xf32>
    %13 = tpu.matmul %6, %12, %cst {dimension_numbers = #tpu.dot_dimension_numbers<[1], [0], [0], [1], [0, 0, 1, 1], [], []>} : vector<128x16xf32>, vector<16x64xf32>, vector<128x64xf32> -> vector<128x64xf32>
    %c0_5 = arith.constant 0 : index
    %c0_6 = arith.constant 0 : index
    %14 = vector.load %arg4[%c0_5, %c0_6] : memref<8x64xf32, #tpu.memory_space<vmem>>, vector<8x64xf32>
    %cst_7 = arith.constant dense<0.000000e+00> : vector<128x64xf32>
    %15 = tpu.matmul %11, %14, %cst_7 {dimension_numbers = #tpu.dot_dimension_numbers<[1], [0], [0], [1], [0, 0, 1, 1], [], []>} : vector<128x8xf32>, vector<8x64xf32>, vector<128x64xf32> -> vector<128x64xf32>
    %16 = tpu.concatenate %13, %15 in 1 : vector<128x64xf32>, vector<128x64xf32> -> vector<128x128xf32>
    %c0_8 = arith.constant 0 : index
    %c0_9 = arith.constant 0 : index
    %17 = vector.load %arg5[%c0_8, %c0_9] : memref<128x128xf32, #tpu.memory_space<vmem>>, vector<128x128xf32>
    tpu.vector_store %arg5[%c0_8, %c0_9], %16 {strides = array<i32>} : memref<128x128xf32, #tpu.memory_space<vmem>>, vector<128x128xf32>,
    return
  }
  func.func @transform_0(%arg0: i32) -> (i32, i32) {
    %c0_i32 = arith.constant 0 : i32
    %c0_i32_0 = arith.constant 0 : i32
    return %arg0, %c0_i32 : i32, i32
  }
  func.func @transform_1(%arg0: i32) -> (i32, i32) {
    %c0_i32 = arith.constant 0 : i32
    %c0_i32_0 = arith.constant 0 : i32
    return %arg0, %c0_i32 : i32, i32
  }
  func.func @transform_2(%arg0: i32) -> (i32, i32) {
    %c0_i32 = arith.constant 0 : i32
    %c0_i32_0 = arith.constant 0 : i32
    %c0_i32_1 = arith.constant 0 : i32
    return %c0_i32, %c0_i32_0 : i32, i32
  }
  func.func @transform_3(%arg0: i32) -> (i32, i32) {
    %c0_i32 = arith.constant 0 : i32
    %c0_i32_0 = arith.constant 0 : i32
    %c0_i32_1 = arith.constant 0 : i32
    return %c0_i32, %c0_i32_0 : i32, i32
  }
  func.func @transform_4(%arg0: i32) -> (i32, i32) {
    %c0_i32 = arith.constant 0 : i32
    %c0_i32_0 = arith.constant 0 : i32
    return %arg0, %c0_i32 : i32, i32
  }
}

</mosaic_0001>

<llo_original>
// kernel: tpu_custom_call.1
$region0: #{tpu_custom_call.1}
  #allocation0 [shape = 'u32[]', space=smem, size = 0x4, offset = 0x4, fixed_abs, tag = 'smem constant byte address 0x4 - core index']
  #allocation1 [shape = 'u32[144,128]{1,0:T(1,128)}', space=vmem, size = 0x12000, scoped, tag = 'internal scratch']
  %s0 = inlined_call_operand.vmem [shape: s32[256,1], index: 0, kind: input, shape index: {}]
  %s1 = inlined_call_operand.vmem [shape: s32[256,1], index: 1, kind: input, shape index: {}]
  %s2 = inlined_call_operand.vmem [shape: f32[16,64], index: 2, kind: input, shape index: {}]
  %s3 = inlined_call_operand.vmem [shape: f32[8,64], index: 3, kind: input, shape index: {}]
  %s4 = inlined_call_operand.hbm [shape: f32[256,128], index: 4, kind: output, shape index: {}]
  %s5 = sld [smem:[#allocation0]]
  $region49: #{tpu_custom_call.1} parent=0
    _
  %s7 = ssub.s32 1, %s5
  %s8 = scalar_select 0, %s7, %s5
  $region1: #{tpu_custom_call.1} parent=0
    #allocation2 [shape = 'u8[131072]{0}', space=vmem, size = 0x20000, scoped, tag = 'output window, operand 0']
    #allocation3 [shape = 's32[2]{0}', space=sflag, size = 0x8, scoped, tag = 'scoped memory for tpu_custom_call.1']
    %9 = vsyncpa [#allocation3], 0
    %s10 = scalar_lea.sflag [#allocation3], 1
    %11 = vsyncpa %s10, 0
    loop: start=0, step=1, limit=4
    $region2: #{tpu_custom_call.1} parent=1 // loop_pre_header
      _
    $region3: #{tpu_custom_call.1} parent=1 // loop_header
      %s13 = sphi 0, %s17
      %p14 = scmp.ge.s32.totalorder %s13, 4
      %s23 = sphi 0, %s25
      %s26 = sphi 0, %s23
      %s27 = sphi 0, %s26
      %s43 = sphi 0, %s27
      %s49 = sphi 0, %s51
      %s52 = sphi 0, %s49
      %s53 = sphi 0, %s52
      %s69 = sphi 0, %s53
      %s73 = sphi 0, %s73
      %s75 = sphi 0, %s73
      %s76 = sphi 0, %s75
      %s90 = sphi 0, %s76
      %s94 = sphi 0, %s94
      %s96 = sphi 0, %s94
      %s97 = sphi 0, %s96
      %s111 = sphi 0, %s97
      %s117 = sphi 0, %s119
      %s120 = sphi 0, %s117
      %s121 = sphi 0, %s120
      %s137 = sphi 0, %s121
    $region4: #{tpu_custom_call.1} parent=1 // loop_header_branch
      %16 = sbr.rel (%p14) target = $region8
    $region5: #{tpu_custom_call.1} parent=1 // loop_body
      %s18 = ssub.s32 %s13, 1
      %s19 = ssub.s32 %s13, 2
      %s20 = sadd.s32 %s13, 1
      %s21 = ssub.s32 %s13, %s20
      %p22 = scmp.eq.s32.totalorder %s21, 0
      %s24 = sadd.s32 %s23, 1
      %s25 = scalar_select %p22, %s23, %s24
      %p28 = pneg %p22
      %p29 = scmp.eq.s32.totalorder %s13, 1
      %p30 = por %p28, %p29
      %p31 = scmp.ne.s32.totalorder %s23, %s26
      %p32 = scmp.eq.s32.totalorder %s13, 0
      %p33 = por %p31, %p32
      %p34 = scmp.ne.s32.totalorder %s23, %s26
      %p35 = scmp.eq.s32.totalorder %s18, 1
      %p36 = por %p34, %p35
      %p37 = scmp.ne.s32.totalorder %s26, %s27
      %p38 = scmp.eq.s32.totalorder %s18, 0
      %p39 = por %p37, %p38
      %p40 = scmp.ne.s32.totalorder %s26, %s27
      %p41 = scmp.eq.s32.totalorder %s19, 1
      %p42 = por %p40, %p41
      %p44 = scmp.ne.s32.totalorder %s27, %s43
      %p45 = scmp.eq.s32.totalorder %s19, 0
      %p46 = por %p44, %p45
      %s47 = ssub.s32 %s13, %s20
      %p48 = scmp.eq.s32.totalorder %s47, 0
      %s50 = sadd.s32 %s49, 1
      %s51 = scalar_select %p48, %s49, %s50
      %p54 = pneg %p48
      %p55 = scmp.eq.s32.totalorder %s13, 1
      %p56 = por %p54, %p55
      %p57 = scmp.ne.s32.totalorder %s49, %s52
      %p58 = scmp.eq.s32.totalorder %s13, 0
      %p59 = por %p57, %p58
      %p60 = scmp.ne.s32.totalorder %s49, %s52
      %p61 = scmp.eq.s32.totalorder %s18, 1
      %p62 = por %p60, %p61
      %p63 = scmp.ne.s32.totalorder %s52, %s53
      %p64 = scmp.eq.s32.totalorder %s18, 0
      %p65 = por %p63, %p64
      %p66 = scmp.ne.s32.totalorder %s52, %s53
      %p67 = scmp.eq.s32.totalorder %s19, 1
      %p68 = por %p66, %p67
      %p70 = scmp.ne.s32.totalorder %s53, %s69
      %p71 = scmp.eq.s32.totalorder %s19, 0
      %p72 = por %p70, %p71
      %s74 = sadd.s32 %s73, 1
      %p77 = scmp.eq.s32.totalorder %s13, 1
      %p78 = scmp.ne.s32.totalorder %s73, %s75
      %p79 = scmp.eq.s32.totalorder %s13, 0
      %p80 = por %p78, %p79
      %p81 = scmp.ne.s32.totalorder %s73, %s75
      %p82 = scmp.eq.s32.totalorder %s18, 1
      %p83 = por %p81, %p82
      %p84 = scmp.ne.s32.totalorder %s75, %s76
      %p85 = scmp.eq.s32.totalorder %s18, 0
      %p86 = por %p84, %p85
      %p87 = scmp.ne.s32.totalorder %s75, %s76
      %p88 = scmp.eq.s32.totalorder %s19, 1
      %p89 = por %p87, %p88
      %p91 = scmp.ne.s32.totalorder %s76, %s90
      %p92 = scmp.eq.s32.totalorder %s19, 0
      %p93 = por %p91, %p92
      %s95 = sadd.s32 %s94, 1
      %p98 = scmp.eq.s32.totalorder %s13, 1
      %p99 = scmp.ne.s32.totalorder %s94, %s96
      %p100 = scmp.eq.s32.totalorder %s13, 0
      %p101 = por %p99, %p100
      %p102 = scmp.ne.s32.totalorder %s94, %s96
      %p103 = scmp.eq.s32.totalorder %s18, 1
      %p104 = por %p102, %p103
      %p105 = scmp.ne.s32.totalorder %s96, %s97
      %p106 = scmp.eq.s32.totalorder %s18, 0
      %p107 = por %p105, %p106
      %p108 = scmp.ne.s32.totalorder %s96, %s97
      %p109 = scmp.eq.s32.totalorder %s19, 1
      %p110 = por %p108, %p109
      %p112 = scmp.ne.s32.totalorder %s97, %s111
      %p113 = scmp.eq.s32.totalorder %s19, 0
      %p114 = por %p112, %p113
      %s115 = ssub.s32 %s13, %s20
      %p116 = scmp.eq.s32.totalorder %s115, 0
      %s118 = sadd.s32 %s117, 1
      %s119 = scalar_select %p116, %s117, %s118
      %p122 = pneg %p116
      %p123 = scmp.eq.s32.totalorder %s13, 1
      %p124 = por %p122, %p123
      %p125 = scmp.ne.s32.totalorder %s117, %s120
      %p126 = scmp.eq.s32.totalorder %s13, 0
      %p127 = por %p125, %p126
      %p128 = scmp.ne.s32.totalorder %s117, %s120
      %p129 = scmp.eq.s32.totalorder %s18, 1
      %p130 = por %p128, %p129
      %p131 = scmp.ne.s32.totalorder %s120, %s121
      %p132 = scmp.eq.s32.totalorder %s18, 0
      %p133 = por %p131, %p132
      %p134 = scmp.ne.s32.totalorder %s120, %s121
      %p135 = scmp.eq.s32.totalorder %s19, 1
      %p136 = por %p134, %p135
      %p138 = scmp.ne.s32.totalorder %s121, %s137
      %p139 = scmp.eq.s32.totalorder %s19, 0
      %p140 = por %p138, %p139
      %p141 = scmp.le.s32.totalorder 1, %s13
      %p142 = scmp.lt.s32.totalorder %s13, 3
      %p143 = pnand %p141, %p142
      %p144 = pneg %p143
      // Predicated region
      $region9: #{tpu_custom_call.1} parent=5 // pred_check
        _
      $region10: #{tpu_custom_call.1} parent=5 // pred_check_branch
        %146 = sbr.rel (%p143) target = $region12
      $region11: #{tpu_custom_call.1} parent=5 // pred_region
        %s147 = ssub.s32 %s13, 1
        // Predicated region
        $region13: #{tpu_custom_call.1} parent=11 // pred_check
          %p148 = pneg %p86
        $region14: #{tpu_custom_call.1} parent=11 // pred_check_branch
          %150 = sbr.rel (%p148) target = $region16
        $region15: #{tpu_custom_call.1} parent=11 // pred_region
          _
        $region16: #{tpu_custom_call.1} parent=11 // pred_fallthru
          _
        // Predicated region
        $region17: #{tpu_custom_call.1} parent=11 // pred_check
          %p151 = pneg %p107
        $region18: #{tpu_custom_call.1} parent=11 // pred_check_branch
          %153 = sbr.rel (%p151) target = $region20
        $region19: #{tpu_custom_call.1} parent=11 // pred_region
          _
        $region20: #{tpu_custom_call.1} parent=11 // pred_fallthru
          _
      $region12: #{tpu_custom_call.1} parent=5 // pred_fallthru
        _
      %p154 = scmp.lt.s32.totalorder %s13, 2
      // Predicated region
      $region21: #{tpu_custom_call.1} parent=5 // pred_check
        %p155 = pneg %p154
      $region22: #{tpu_custom_call.1} parent=5 // pred_check_branch
        %157 = sbr.rel (%p155) target = $region24
      $region23: #{tpu_custom_call.1} parent=5 // pred_region
        // Predicated region
        $region25: #{tpu_custom_call.1} parent=23 // pred_check
          %p158 = pneg %p33
        $region26: #{tpu_custom_call.1} parent=23 // pred_check_branch
          %160 = sbr.rel (%p158) target = $region28
        $region27: #{tpu_custom_call.1} parent=23 // pred_region
          %s161 = smul.u32 16, %s13
          %p162 = scmp.lt.s32.totalorder %s161, 31
          %s163 = scalar_select %p162, %s161, 31
          %s164 = smul.addr %s163, 8
          %s165 = scalar_lea.vmem %s0, %s164
          %s166 = smul.u32 16, %s13
        $region28: #{tpu_custom_call.1} parent=23 // pred_fallthru
          _
        // Predicated region
        $region29: #{tpu_custom_call.1} parent=23 // pred_check
          %p167 = pneg %p59
        $region30: #{tpu_custom_call.1} parent=23 // pred_check_branch
          %169 = sbr.rel (%p167) target = $region32
        $region31: #{tpu_custom_call.1} parent=23 // pred_region
          %s170 = smul.u32 16, %s13
          %p171 = scmp.lt.s32.totalorder %s170, 31
          %s172 = scalar_select %p171, %s170, 31
          %s173 = smul.addr %s172, 8
          %s174 = scalar_lea.vmem %s1, %s173
          %s175 = smul.u32 16, %s13
        $region32: #{tpu_custom_call.1} parent=23 // pred_fallthru
          _
      $region24: #{tpu_custom_call.1} parent=5 // pred_fallthru
        _
      %p176 = scmp.le.s32.totalorder 1, %s13
      %p177 = scmp.lt.s32.totalorder %s13, 3
      %p178 = pnand %p176, %p177
      %p179 = pneg %p178
      // Predicated region
      $region33: #{tpu_custom_call.1} parent=5 // pred_check
        _
      $region34: #{tpu_custom_call.1} parent=5 // pred_check_branch
        %181 = sbr.rel (%p178) target = $region36
      $region35: #{tpu_custom_call.1} parent=5 // pred_region
        %s182 = ssub.s32 %s13, 1
        %s183 = smul.u32 16, %s18
        %p184 = scmp.lt.s32.totalorder %s183, 31
        %s185 = scalar_select %p184, %s183, 31
        %s186 = smul.addr %s185, 8
        %s187 = scalar_lea.vmem %s0, %s186
        %p188 = pneg %p39
        %p189 = pneg %p36
        %s190 = smul.u32 16, %s18
        %p191 = scmp.lt.s32.totalorder %s190, 31
        %s192 = scalar_select %p191, %s190, 31
        %s193 = smul.addr %s192, 8
        %s194 = scalar_lea.vmem %s1, %s193
        %p195 = pneg %p65
        %p196 = pneg %p62
        %p197 = pneg %p86
        %p198 = pneg %p83
        %p199 = pneg %p107
        %p200 = pneg %p104
        %p201 = pneg %p133
        %p202 = pneg %p130
        %s203 = sand.u32 %s120, 1
        %s204 = scalar_lea.sflag [#allocation3], %s203
        %s205 = sand.u32 %s120, 1
        %s206 = smul.addr %s205, 128
        %s207 = scalar_lea.vmem [#allocation2], %s206
        %s208 = smul.u32 16, %s18
        %p209 = scmp.lt.s32.totalorder %s208, 31
        %s210 = scalar_select %p209, %s208, 31
        %s211 = smul.addr %s210, 8
        %s212 = scalar_lea.vmem %s0, %s211
        %s213 = smul.u32 16, %s18
        %s214 = smul.u32 16, %s18
        %p215 = scmp.lt.s32.totalorder %s214, 31
        %s216 = scalar_select %p215, %s214, 31
        %s217 = smul.addr %s216, 8
        %s218 = scalar_lea.vmem %s1, %s217
        %s219 = smul.u32 16, %s18
        %s220 = smul.u32 16, %s18
        %v221 = vld [vmem:[%s212] sm:$0xff]
        %v222 = vld [vmem:[%s212 + $0x8] sm:$0xff]
        %v223 = vld [vmem:[%s212 + $0x10] sm:$0xff]
        %v224 = vld [vmem:[%s212 + $0x18] sm:$0xff]
        %v225 = vld [vmem:[%s212 + $0x20] sm:$0xff]
        %v226 = vld [vmem:[%s212 + $0x28] sm:$0xff]
        %v227 = vld [vmem:[%s212 + $0x30] sm:$0xff]
        %v228 = vld [vmem:[%s212 + $0x38] sm:$0xff]
        %v229 = vld [vmem:[%s212 + $0x40] sm:$0xff]
        %v230 = vld [vmem:[%s212 + $0x48] sm:$0xff]
        %v231 = vld [vmem:[%s212 + $0x50] sm:$0xff]
        %v232 = vld [vmem:[%s212 + $0x58] sm:$0xff]
        %v233 = vld [vmem:[%s212 + $0x60] sm:$0xff]
        %v234 = vld [vmem:[%s212 + $0x68] sm:$0xff]
        %v235 = vld [vmem:[%s212 + $0x70] sm:$0xff]
        %v236 = vld [vmem:[%s212 + $0x78] sm:$0xff]
        %v237 = vld [vmem:[%s218] sm:$0xff]
        %v238 = vld [vmem:[%s218 + $0x8] sm:$0xff]
        %v239 = vld [vmem:[%s218 + $0x10] sm:$0xff]
        %v240 = vld [vmem:[%s218 + $0x18] sm:$0xff]
        %v241 = vld [vmem:[%s218 + $0x20] sm:$0xff]
        %v242 = vld [vmem:[%s218 + $0x28] sm:$0xff]
        %v243 = vld [vmem:[%s218 + $0x30] sm:$0xff]
        %v244 = vld [vmem:[%s218 + $0x38] sm:$0xff]
        %v245 = vld [vmem:[%s218 + $0x40] sm:$0xff]
        %v246 = vld [vmem:[%s218 + $0x48] sm:$0xff]
        %v247 = vld [vmem:[%s218 + $0x50] sm:$0xff]
        %v248 = vld [vmem:[%s218 + $0x58] sm:$0xff]
        %v249 = vld [vmem:[%s218 + $0x60] sm:$0xff]
        %v250 = vld [vmem:[%s218 + $0x68] sm:$0xff]
        %v251 = vld [vmem:[%s218 + $0x70] sm:$0xff]
        %v252 = vld [vmem:[%s218 + $0x78] sm:$0xff]
        %v253 = vlaneseq
        %v254 = vand.u32 %v253, 127
        %255 = vset.pattern.permute.xlu0 0
        %256 = vperm.xlu0 %255, %v221
        %v257 = vpop.permute.xlu0 %256
        %258 = vset.pattern.permute.xlu0 0
        %259 = vperm.xlu0 %258, %v222
        %v260 = vpop.permute.xlu0 %259
        %261 = vset.pattern.permute.xlu0 0
        %262 = vperm.xlu0 %261, %v223
        %v263 = vpop.permute.xlu0 %262
        %264 = vset.pattern.permute.xlu0 0
        %265 = vperm.xlu0 %264, %v224
        %v266 = vpop.permute.xlu0 %265
        %267 = vset.pattern.permute.xlu0 0
        %268 = vperm.xlu0 %267, %v225
        %v269 = vpop.permute.xlu0 %268
        %270 = vset.pattern.permute.xlu0 0
        %271 = vperm.xlu0 %270, %v226
        %v272 = vpop.permute.xlu0 %271
        %273 = vset.pattern.permute.xlu0 0
        %274 = vperm.xlu0 %273, %v227
        %v275 = vpop.permute.xlu0 %274
        %276 = vset.pattern.permute.xlu0 0
        %277 = vperm.xlu0 %276, %v228
        %v278 = vpop.permute.xlu0 %277
        %279 = vset.pattern.permute.xlu0 0
        %280 = vperm.xlu0 %279, %v229
        %v281 = vpop.permute.xlu0 %280
        %282 = vset.pattern.permute.xlu0 0
        %283 = vperm.xlu0 %282, %v230
        %v284 = vpop.permute.xlu0 %283
        %285 = vset.pattern.permute.xlu0 0
        %286 = vperm.xlu0 %285, %v231
        %v287 = vpop.permute.xlu0 %286
        %288 = vset.pattern.permute.xlu0 0
        %289 = vperm.xlu0 %288, %v232
        %v290 = vpop.permute.xlu0 %289
        %291 = vset.pattern.permute.xlu0 0
        %292 = vperm.xlu0 %291, %v233
        %v293 = vpop.permute.xlu0 %292
        %294 = vset.pattern.permute.xlu0 0
        %295 = vperm.xlu0 %294, %v234
        %v296 = vpop.permute.xlu0 %295
        %297 = vset.pattern.permute.xlu0 0
        %298 = vperm.xlu0 %297, %v235
        %v299 = vpop.permute.xlu0 %298
        %300 = vset.pattern.permute.xlu0 0
        %301 = vperm.xlu0 %300, %v236
        %v302 = vpop.permute.xlu0 %301
        %vm303 = vcmp.eq.s32.totalorder %v257, %v254
        %vm304 = vcmp.eq.s32.totalorder %v260, %v254
        %vm305 = vcmp.eq.s32.totalorder %v263, %v254
        %vm306 = vcmp.eq.s32.totalorder %v266, %v254
        %vm307 = vcmp.eq.s32.totalorder %v269, %v254
        %vm308 = vcmp.eq.s32.totalorder %v272, %v254
        %vm309 = vcmp.eq.s32.totalorder %v275, %v254
        %vm310 = vcmp.eq.s32.totalorder %v278, %v254
        %vm311 = vcmp.eq.s32.totalorder %v281, %v254
        %vm312 = vcmp.eq.s32.totalorder %v284, %v254
        %vm313 = vcmp.eq.s32.totalorder %v287, %v254
        %vm314 = vcmp.eq.s32.totalorder %v290, %v254
        %vm315 = vcmp.eq.s32.totalorder %v293, %v254
        %vm316 = vcmp.eq.s32.totalorder %v296, %v254
        %vm317 = vcmp.eq.s32.totalorder %v299, %v254
        %vm318 = vcmp.eq.s32.totalorder %v302, %v254
        %v319 = vsel %vm303, 1, 0
        %v320 = vsel %vm304, 1, 0
        %v321 = vsel %vm305, 1, 0
        %v322 = vsel %vm306, 1, 0
        %v323 = vsel %vm307, 1, 0
        %v324 = vsel %vm308, 1, 0
        %v325 = vsel %vm309, 1, 0
        %v326 = vsel %vm310, 1, 0
        %v327 = vsel %vm311, 1, 0
        %v328 = vsel %vm312, 1, 0
        %v329 = vsel %vm313, 1, 0
        %v330 = vsel %vm314, 1, 0
        %v331 = vsel %vm315, 1, 0
        %v332 = vsel %vm316, 1, 0
        %v333 = vsel %vm317, 1, 0
        %v334 = vsel %vm318, 1, 0
        %v335 = vcvt.s32.f32 %v319
        %v336 = vcvt.s32.f32 %v320
        %v337 = vcvt.s32.f32 %v321
        %v338 = vcvt.s32.f32 %v322
        %v339 = vcvt.s32.f32 %v323
        %v340 = vcvt.s32.f32 %v324
        %v341 = vcvt.s32.f32 %v325
        %v342 = vcvt.s32.f32 %v326
        %v343 = vcvt.s32.f32 %v327
        %v344 = vcvt.s32.f32 %v328
        %v345 = vcvt.s32.f32 %v329
        %v346 = vcvt.s32.f32 %v330
        %v347 = vcvt.s32.f32 %v331
        %v348 = vcvt.s32.f32 %v332
        %v349 = vcvt.s32.f32 %v333
        %v350 = vcvt.s32.f32 %v334
        %351 = vset.pattern.permute.xlu0 0
        %352 = vperm.xlu0 %351, %v237
        %v353 = vpop.permute.xlu0 %352
        %354 = vset.pattern.permute.xlu0 0
        %355 = vperm.xlu0 %354, %v238
        %v356 = vpop.permute.xlu0 %355
        %357 = vset.pattern.permute.xlu0 0
        %358 = vperm.xlu0 %357, %v239
        %v359 = vpop.permute.xlu0 %358
        %360 = vset.pattern.permute.xlu0 0
        %361 = vperm.xlu0 %360, %v240
        %v362 = vpop.permute.xlu0 %361
        %363 = vset.pattern.permute.xlu0 0
        %364 = vperm.xlu0 %363, %v241
        %v365 = vpop.permute.xlu0 %364
        %366 = vset.pattern.permute.xlu0 0
        %367 = vperm.xlu0 %366, %v242
        %v368 = vpop.permute.xlu0 %367
        %369 = vset.pattern.permute.xlu0 0
        %370 = vperm.xlu0 %369, %v243
        %v371 = vpop.permute.xlu0 %370
        %372 = vset.pattern.permute.xlu0 0
        %373 = vperm.xlu0 %372, %v244
        %v374 = vpop.permute.xlu0 %373
        %375 = vset.pattern.permute.xlu0 0
        %376 = vperm.xlu0 %375, %v245
        %v377 = vpop.permute.xlu0 %376
        %378 = vset.pattern.permute.xlu0 0
        %379 = vperm.xlu0 %378, %v246
        %v380 = vpop.permute.xlu0 %379
        %381 = vset.pattern.permute.xlu0 0
        %382 = vperm.xlu0 %381, %v247
        %v383 = vpop.permute.xlu0 %382
        %384 = vset.pattern.permute.xlu0 0
        %385 = vperm.xlu0 %384, %v248
        %v386 = vpop.permute.xlu0 %385
        %387 = vset.pattern.permute.xlu0 0
        %388 = vperm.xlu0 %387, %v249
        %v389 = vpop.permute.xlu0 %388
        %390 = vset.pattern.permute.xlu0 0
        %391 = vperm.xlu0 %390, %v250
        %v392 = vpop.permute.xlu0 %391
        %393 = vset.pattern.permute.xlu0 0
        %394 = vperm.xlu0 %393, %v251
        %v395 = vpop.permute.xlu0 %394
        %396 = vset.pattern.permute.xlu0 0
        %397 = vperm.xlu0 %396, %v252
        %v398 = vpop.permute.xlu0 %397
        %vm399 = vcmp.eq.s32.totalorder %v353, %v254
        %vm400 = vcmp.eq.s32.totalorder %v356, %v254
        %vm401 = vcmp.eq.s32.totalorder %v359, %v254
        %vm402 = vcmp.eq.s32.totalorder %v362, %v254
        %vm403 = vcmp.eq.s32.totalorder %v365, %v254
        %vm404 = vcmp.eq.s32.totalorder %v368, %v254
        %vm405 = vcmp.eq.s32.totalorder %v371, %v254
        %vm406 = vcmp.eq.s32.totalorder %v374, %v254
        %vm407 = vcmp.eq.s32.totalorder %v377, %v254
        %vm408 = vcmp.eq.s32.totalorder %v380, %v254
        %vm409 = vcmp.eq.s32.totalorder %v383, %v254
        %vm410 = vcmp.eq.s32.totalorder %v386, %v254
        %vm411 = vcmp.eq.s32.totalorder %v389, %v254
        %vm412 = vcmp.eq.s32.totalorder %v392, %v254
        %vm413 = vcmp.eq.s32.totalorder %v395, %v254
        %vm414 = vcmp.eq.s32.totalorder %v398, %v254
        %v415 = vsel %vm399, 1, 0
        %v416 = vsel %vm400, 1, 0
        %v417 = vsel %vm401, 1, 0
        %v418 = vsel %vm402, 1, 0
        %v419 = vsel %vm403, 1, 0
        %v420 = vsel %vm404, 1, 0
        %v421 = vsel %vm405, 1, 0
        %v422 = vsel %vm406, 1, 0
        %v423 = vsel %vm407, 1, 0
        %v424 = vsel %vm408, 1, 0
        %v425 = vsel %vm409, 1, 0
        %v426 = vsel %vm410, 1, 0
        %v427 = vsel %vm411, 1, 0
        %v428 = vsel %vm412, 1, 0
        %v429 = vsel %vm413, 1, 0
        %v430 = vsel %vm414, 1, 0
        %v431 = vcvt.s32.f32 %v415
        %v432 = vcvt.s32.f32 %v416
        %v433 = vcvt.s32.f32 %v417
        %v434 = vcvt.s32.f32 %v418
        %v435 = vcvt.s32.f32 %v419
        %v436 = vcvt.s32.f32 %v420
        %v437 = vcvt.s32.f32 %v421
        %v438 = vcvt.s32.f32 %v422
        %v439 = vcvt.s32.f32 %v423
        %v440 = vcvt.s32.f32 %v424
        %v441 = vcvt.s32.f32 %v425
        %v442 = vcvt.s32.f32 %v426
        %v443 = vcvt.s32.f32 %v427
        %v444 = vcvt.s32.f32 %v428
        %v445 = vcvt.s32.f32 %v429
        %v446 = vcvt.s32.f32 %v430
        %v447 = vld [vmem:[%s2] sm:$0xff]
        %v448 = vld [vmem:[%s2 + $0x8] sm:$0xff]
        %vm449 = vcmask 130048
        %v451 = vsel %vm449, %v335, 0
        %v454 = vsel %vm449, %v336, 0
        %v457 = vsel %vm449, %v337, 0
        %v460 = vsel %vm449, %v338, 0
        %v463 = vsel %vm449, %v339, 0
        %v466 = vsel %vm449, %v340, 0
        %v469 = vsel %vm449, %v341, 0
        %v472 = vsel %vm449, %v342, 0
        %v475 = vsel %vm449, %v343, 0
        %v478 = vsel %vm449, %v344, 0
        %v481 = vsel %vm449, %v345, 0
        %v484 = vsel %vm449, %v346, 0
        %v487 = vsel %vm449, %v347, 0
        %v490 = vsel %vm449, %v348, 0
        %v493 = vsel %vm449, %v349, 0
        %v496 = vsel %vm449, %v350, 0
        %498 = vmatprep.subr.mxu0 0.0
        %499 = vmatpush1.msra.mxu0 %v447
        %500 = vmatprep.subr.mxu0 0.0
        %501 = vmatpush1.msra.mxu0 %v448
        %502 = vmatprep.subr.mxu0 0.0
        %503 = vmatpush1.msra.mxu0 0.0
        %504 = vmatprep.subr.mxu0 0.0
        %505 = vmatpush1.msra.mxu0 0.0
        %506 = vmatprep.subr.mxu0 0.0
        %507 = vmatpush1.msra.mxu0 0.0
        %508 = vmatprep.subr.mxu0 0.0
        %509 = vmatpush1.msra.mxu0 0.0
        %510 = vmatprep.subr.mxu0 0.0
        %511 = vmatpush1.msra.mxu0 0.0
        %512 = vmatprep.subr.mxu0 0.0
        %513 = vmatpush1.msra.mxu0 0.0
        %514 = vmatprep.subr.mxu0 0.0
        %515 = vmatpush1.msra.mxu0 0.0
        %516 = vmatprep.subr.mxu0 0.0
        %517 = vmatpush1.msra.mxu0 0.0
        %518 = vmatprep.subr.mxu0 0.0
        %519 = vmatpush1.msra.mxu0 0.0
        %520 = vmatprep.subr.mxu0 0.0
        %521 = vmatpush1.msra.mxu0 0.0
        %522 = vmatprep.subr.mxu0 0.0
        %523 = vmatpush1.msra.mxu0 0.0
        %524 = vmatprep.subr.mxu0 0.0
        %525 = vmatpush1.msra.mxu0 0.0
        %526 = vmatprep.subr.mxu0 0.0
        %527 = vmatpush1.msra.mxu0 0.0
        %528 = vmatprep.subr.mxu0 0.0
        %529 = vmatpush1.msra.mxu0 0.0
        %530 = vmatprep.subr.mxu0 0.0
        %531 = vmatpush1.msra.mxu0 0.0
        %532 = vmatprep.subr.mxu0 0.0
        %533 = vmatpush1.msra.mxu0 0.0
        %534 = vmatprep.subr.mxu0 0.0
        %535 = vmatpush1.msra.mxu0 0.0
        %536 = vmatprep.subr.mxu0 0.0
        %537 = vmatpush1.msra.mxu0 0.0
        %538 = vmatprep.subr.mxu0 0.0
        %539 = vmatpush1.msra.mxu0 0.0
        %540 = vmatprep.subr.mxu0 0.0
        %541 = vmatpush1.msra.mxu0 0.0
        %542 = vmatprep.subr.mxu0 0.0
        %543 = vmatpush1.msra.mxu0 0.0
        %544 = vmatprep.subr.mxu0 0.0
        %545 = vmatpush1.msra.mxu0 0.0
        %546 = vmatprep.subr.mxu0 0.0
        %547 = vmatpush1.msra.mxu0 0.0
        %548 = vmatprep.subr.mxu0 0.0
        %549 = vmatpush1.msra.mxu0 0.0
        %550 = vmatprep.subr.mxu0 0.0
        %551 = vmatpush1.msra.mxu0 0.0
        %552 = vmatprep.subr.mxu0 0.0
        %553 = vmatpush1.msra.mxu0 0.0
        %554 = vmatprep.subr.mxu0 0.0
        %555 = vmatpush1.msra.mxu0 0.0
        %556 = vmatprep.subr.mxu0 0.0
        %557 = vmatpush1.msra.mxu0 0.0
        %558 = vmatprep.subr.mxu0 0.0
        %559 = vmatpush1.msra.mxu0 0.0
        %560 = vmatprep.subr.mxu0 0.0
        %561 = vmatpush1.msra.mxu0 0.0
        %562 = vmatprep.mubr.f32.mxu0 0.0
        %563 = vmatmul.mubr.f32.gmra.mrb[0].mxu0 %v451
        %v564 = vpop.f32.mrb[0].mxu0
        %v565 = vadd.f32 0.0, %v564
        %v566 = vpop.f32.mrb[0].mxu0
        %567 = vmatprep.mubr.f32.mxu0 0.0
        %568 = vmatmul.mubr.f32.gmra.mrb[0].mxu0 %v454
        %v569 = vpop.f32.mrb[0].mxu0
        %v570 = vadd.f32 0.0, %v569
        %v571 = vpop.f32.mrb[0].mxu0
        %572 = vmatprep.mubr.f32.mxu0 0.0
        %573 = vmatmul.mubr.f32.gmra.mrb[0].mxu0 %v457
        %v574 = vpop.f32.mrb[0].mxu0
        %v575 = vadd.f32 0.0, %v574
        %v576 = vpop.f32.mrb[0].mxu0
        %577 = vmatprep.mubr.f32.mxu0 0.0
        %578 = vmatmul.mubr.f32.gmra.mrb[0].mxu0 %v460
        %v579 = vpop.f32.mrb[0].mxu0
        %v580 = vadd.f32 0.0, %v579
        %v581 = vpop.f32.mrb[0].mxu0
        %582 = vmatprep.mubr.f32.mxu0 0.0
        %583 = vmatmul.mubr.f32.gmra.mrb[0].mxu0 %v463
        %v584 = vpop.f32.mrb[0].mxu0
        %v585 = vadd.f32 0.0, %v584
        %v586 = vpop.f32.mrb[0].mxu0
        %587 = vmatprep.mubr.f32.mxu0 0.0
        %588 = vmatmul.mubr.f32.gmra.mrb[0].mxu0 %v466
        %v589 = vpop.f32.mrb[0].mxu0
        %v590 = vadd.f32 0.0, %v589
        %v591 = vpop.f32.mrb[0].mxu0
        %592 = vmatprep.mubr.f32.mxu0 0.0
        %593 = vmatmul.mubr.f32.gmra.mrb[0].mxu0 %v469
        %v594 = vpop.f32.mrb[0].mxu0
        %v595 = vadd.f32 0.0, %v594
        %v596 = vpop.f32.mrb[0].mxu0
        %597 = vmatprep.mubr.f32.mxu0 0.0
        %598 = vmatmul.mubr.f32.gmra.mrb[0].mxu0 %v472
        %v599 = vpop.f32.mrb[0].mxu0
        %v600 = vadd.f32 0.0, %v599
        %v601 = vpop.f32.mrb[0].mxu0
        %602 = vmatprep.mubr.f32.mxu0 0.0
        %603 = vmatmul.mubr.f32.gmra.mrb[0].mxu0 %v475
        %v604 = vpop.f32.mrb[0].mxu0
        %v605 = vadd.f32 0.0, %v604
        %v606 = vpop.f32.mrb[0].mxu0
        %607 = vmatprep.mubr.f32.mxu0 0.0
        %608 = vmatmul.mubr.f32.gmra.mrb[0].mxu0 %v478
        %v609 = vpop.f32.mrb[0].mxu0
        %v610 = vadd.f32 0.0, %v609
        %v611 = vpop.f32.mrb[0].mxu0
        %612 = vmatprep.mubr.f32.mxu0 0.0
        %613 = vmatmul.mubr.f32.gmra.mrb[0].mxu0 %v481
        %v614 = vpop.f32.mrb[0].mxu0
        %v615 = vadd.f32 0.0, %v614
        %v616 = vpop.f32.mrb[0].mxu0
        %617 = vmatprep.mubr.f32.mxu0 0.0
        %618 = vmatmul.mubr.f32.gmra.mrb[0].mxu0 %v484
        %v619 = vpop.f32.mrb[0].mxu0
        %v620 = vadd.f32 0.0, %v619
        %v621 = vpop.f32.mrb[0].mxu0
        %622 = vmatprep.mubr.f32.mxu0 0.0
        %623 = vmatmul.mubr.f32.gmra.mrb[0].mxu0 %v487
        %v624 = vpop.f32.mrb[0].mxu0
        %v625 = vadd.f32 0.0, %v624
        %v626 = vpop.f32.mrb[0].mxu0
        %627 = vmatprep.mubr.f32.mxu0 0.0
        %628 = vmatmul.mubr.f32.gmra.mrb[0].mxu0 %v490
        %v629 = vpop.f32.mrb[0].mxu0
        %v630 = vadd.f32 0.0, %v629
        %v631 = vpop.f32.mrb[0].mxu0
        %632 = vmatprep.mubr.f32.mxu0 0.0
        %633 = vmatmul.mubr.f32.gmra.mrb[0].mxu0 %v493
        %v634 = vpop.f32.mrb[0].mxu0
        %v635 = vadd.f32 0.0, %v634
        %v636 = vpop.f32.mrb[0].mxu0
        %637 = vmatprep.mubr.f32.mxu0 0.0
        %638 = vmatmul.mubr.f32.gmra.mrb[0].mxu0 %v496
        %v639 = vpop.f32.mrb[0].mxu0
        %v640 = vadd.f32 0.0, %v639
        %v641 = vpop.f32.mrb[0].mxu0
        %642 = vdwg.mxu0
        %v643 = vld [vmem:[%s3] sm:$0xff]
        %vm644 = vcmask 64512
        %v646 = vsel %vm644, %v431, 0
        %v649 = vsel %vm644, %v432, 0
        %v652 = vsel %vm644, %v433, 0
        %v655 = vsel %vm644, %v434, 0
        %v658 = vsel %vm644, %v435, 0
        %v661 = vsel %vm644, %v436, 0
        %v664 = vsel %vm644, %v437, 0
        %v667 = vsel %vm644, %v438, 0
        %v670 = vsel %vm644, %v439, 0
        %v673 = vsel %vm644, %v440, 0
        %v676 = vsel %vm644, %v441, 0
        %v679 = vsel %vm644, %v442, 0
        %v682 = vsel %vm644, %v443, 0
        %v685 = vsel %vm644, %v444, 0
        %v688 = vsel %vm644, %v445, 0
        %v691 = vsel %vm644, %v446, 0
        %693 = vmatprep.subr.mxu0 0.0
        %694 = vmatpush1.msra.mxu0 %v643
        %695 = vmatprep.subr.mxu0 0.0
        %696 = vmatpush1.msra.mxu0 0.0
        %697 = vmatprep.subr.mxu0 0.0
        %698 = vmatpush1.msra.mxu0 0.0
        %699 = vmatprep.subr.mxu0 0.0
        %700 = vmatpush1.msra.mxu0 0.0
        %701 = vmatprep.subr.mxu0 0.0
        %702 = vmatpush1.msra.mxu0 0.0
        %703 = vmatprep.subr.mxu0 0.0
        %704 = vmatpush1.msra.mxu0 0.0
        %705 = vmatprep.subr.mxu0 0.0
        %706 = vmatpush1.msra.mxu0 0.0
        %707 = vmatprep.subr.mxu0 0.0
        %708 = vmatpush1.msra.mxu0 0.0
        %709 = vmatprep.subr.mxu0 0.0
        %710 = vmatpush1.msra.mxu0 0.0
        %711 = vmatprep.subr.mxu0 0.0
        %712 = vmatpush1.msra.mxu0 0.0
        %713 = vmatprep.subr.mxu0 0.0
        %714 = vmatpush1.msra.mxu0 0.0
        %715 = vmatprep.subr.mxu0 0.0
        %716 = vmatpush1.msra.mxu0 0.0
        %717 = vmatprep.subr.mxu0 0.0
        %718 = vmatpush1.msra.mxu0 0.0
        %719 = vmatprep.subr.mxu0 0.0
        %720 = vmatpush1.msra.mxu0 0.0
        %721 = vmatprep.subr.mxu0 0.0
        %722 = vmatpush1.msra.mxu0 0.0
        %723 = vmatprep.subr.mxu0 0.0
        %724 = vmatpush1.msra.mxu0 0.0
        %725 = vmatprep.subr.mxu0 0.0
        %726 = vmatpush1.msra.mxu0 0.0
        %727 = vmatprep.subr.mxu0 0.0
        %728 = vmatpush1.msra.mxu0 0.0
        %729 = vmatprep.subr.mxu0 0.0
        %730 = vmatpush1.msra.mxu0 0.0
        %731 = vmatprep.subr.mxu0 0.0
        %732 = vmatpush1.msra.mxu0 0.0
        %733 = vmatprep.subr.mxu0 0.0
        %734 = vmatpush1.msra.mxu0 0.0
        %735 = vmatprep.subr.mxu0 0.0
        %736 = vmatpush1.msra.mxu0 0.0
        %737 = vmatprep.subr.mxu0 0.0
        %738 = vmatpush1.msra.mxu0 0.0
        %739 = vmatprep.subr.mxu0 0.0
        %740 = vmatpush1.msra.mxu0 0.0
        %741 = vmatprep.subr.mxu0 0.0
        %742 = vmatpush1.msra.mxu0 0.0
        %743 = vmatprep.subr.mxu0 0.0
        %744 = vmatpush1.msra.mxu0 0.0
        %745 = vmatprep.subr.mxu0 0.0
        %746 = vmatpush1.msra.mxu0 0.0
        %747 = vmatprep.subr.mxu0 0.0
        %748 = vmatpush1.msra.mxu0 0.0
        %749 = vmatprep.subr.mxu0 0.0
        %750 = vmatpush1.msra.mxu0 0.0
        %751 = vmatprep.subr.mxu0 0.0
        %752 = vmatpush1.msra.mxu0 0.0
        %753 = vmatprep.subr.mxu0 0.0
        %754 = vmatpush1.msra.mxu0 0.0
        %755 = vmatprep.subr.mxu0 0.0
        %756 = vmatpush1.msra.mxu0 0.0
        %757 = vmatprep.mubr.f32.mxu0 0.0
        %758 = vmatmul.mubr.f32.gmra.mrb[0].mxu0 %v646
        %v759 = vpop.f32.mrb[0].mxu0
        %v760 = vadd.f32 0.0, %v759
        %v761 = vpop.f32.mrb[0].mxu0
        %762 = vmatprep.mubr.f32.mxu0 0.0
        %763 = vmatmul.mubr.f32.gmra.mrb[0].mxu0 %v649
        %v764 = vpop.f32.mrb[0].mxu0
        %v765 = vadd.f32 0.0, %v764
        %v766 = vpop.f32.mrb[0].mxu0
        %767 = vmatprep.mubr.f32.mxu0 0.0
        %768 = vmatmul.mubr.f32.gmra.mrb[0].mxu0 %v652
        %v769 = vpop.f32.mrb[0].mxu0
        %v770 = vadd.f32 0.0, %v769
        %v771 = vpop.f32.mrb[0].mxu0
        %772 = vmatprep.mubr.f32.mxu0 0.0
        %773 = vmatmul.mubr.f32.gmra.mrb[0].mxu0 %v655
        %v774 = vpop.f32.mrb[0].mxu0
        %v775 = vadd.f32 0.0, %v774
        %v776 = vpop.f32.mrb[0].mxu0
        %777 = vmatprep.mubr.f32.mxu0 0.0
        %778 = vmatmul.mubr.f32.gmra.mrb[0].mxu0 %v658
        %v779 = vpop.f32.mrb[0].mxu0
        %v780 = vadd.f32 0.0, %v779
        %v781 = vpop.f32.mrb[0].mxu0
        %782 = vmatprep.mubr.f32.mxu0 0.0
        %783 = vmatmul.mubr.f32.gmra.mrb[0].mxu0 %v661
        %v784 = vpop.f32.mrb[0].mxu0
        %v785 = vadd.f32 0.0, %v784
        %v786 = vpop.f32.mrb[0].mxu0
        %787 = vmatprep.mubr.f32.mxu0 0.0
        %788 = vmatmul.mubr.f32.gmra.mrb[0].mxu0 %v664
        %v789 = vpop.f32.mrb[0].mxu0
        %v790 = vadd.f32 0.0, %v789
        %v791 = vpop.f32.mrb[0].mxu0
        %792 = vmatprep.mubr.f32.mxu0 0.0
        %793 = vmatmul.mubr.f32.gmra.mrb[0].mxu0 %v667
        %v794 = vpop.f32.mrb[0].mxu0
        %v795 = vadd.f32 0.0, %v794
        %v796 = vpop.f32.mrb[0].mxu0
        %797 = vmatprep.mubr.f32.mxu0 0.0
        %798 = vmatmul.mubr.f32.gmra.mrb[0].mxu0 %v670
        %v799 = vpop.f32.mrb[0].mxu0
        %v800 = vadd.f32 0.0, %v799
        %v801 = vpop.f32.mrb[0].mxu0
        %802 = vmatprep.mubr.f32.mxu0 0.0
        %803 = vmatmul.mubr.f32.gmra.mrb[0].mxu0 %v673
        %v804 = vpop.f32.mrb[0].mxu0
        %v805 = vadd.f32 0.0, %v804
        %v806 = vpop.f32.mrb[0].mxu0
        %807 = vmatprep.mubr.f32.mxu0 0.0
        %808 = vmatmul.mubr.f32.gmra.mrb[0].mxu0 %v676
        %v809 = vpop.f32.mrb[0].mxu0
        %v810 = vadd.f32 0.0, %v809
        %v811 = vpop.f32.mrb[0].mxu0
        %812 = vmatprep.mubr.f32.mxu0 0.0
        %813 = vmatmul.mubr.f32.gmra.mrb[0].mxu0 %v679
        %v814 = vpop.f32.mrb[0].mxu0
        %v815 = vadd.f32 0.0, %v814
        %v816 = vpop.f32.mrb[0].mxu0
        %817 = vmatprep.mubr.f32.mxu0 0.0
        %818 = vmatmul.mubr.f32.gmra.mrb[0].mxu0 %v682
        %v819 = vpop.f32.mrb[0].mxu0
        %v820 = vadd.f32 0.0, %v819
        %v821 = vpop.f32.mrb[0].mxu0
        %822 = vmatprep.mubr.f32.mxu0 0.0
        %823 = vmatmul.mubr.f32.gmra.mrb[0].mxu0 %v685
        %v824 = vpop.f32.mrb[0].mxu0
        %v825 = vadd.f32 0.0, %v824
        %v826 = vpop.f32.mrb[0].mxu0
        %827 = vmatprep.mubr.f32.mxu0 0.0
        %828 = vmatmul.mubr.f32.gmra.mrb[0].mxu0 %v688
        %v829 = vpop.f32.mrb[0].mxu0
        %v830 = vadd.f32 0.0, %v829
        %v831 = vpop.f32.mrb[0].mxu0
        %832 = vmatprep.mubr.f32.mxu0 0.0
        %833 = vmatmul.mubr.f32.gmra.mrb[0].mxu0 %v691
        %v834 = vpop.f32.mrb[0].mxu0
        %v835 = vadd.f32 0.0, %v834
        %v836 = vpop.f32.mrb[0].mxu0
        %837 = vdwg.mxu0
        %854 = vrot.lane.b32.xlu0 %v760, 64
        %v855 = vpop.permute.xlu0 %854
        %856 = vrot.lane.b32.xlu0 %v765, 64
        %v857 = vpop.permute.xlu0 %856
        %858 = vrot.lane.b32.xlu0 %v770, 64
        %v859 = vpop.permute.xlu0 %858
        %860 = vrot.lane.b32.xlu0 %v775, 64
        %v861 = vpop.permute.xlu0 %860
        %862 = vrot.lane.b32.xlu0 %v780, 64
        %v863 = vpop.permute.xlu0 %862
        %864 = vrot.lane.b32.xlu0 %v785, 64
        %v865 = vpop.permute.xlu0 %864
        %866 = vrot.lane.b32.xlu0 %v790, 64
        %v867 = vpop.permute.xlu0 %866
        %868 = vrot.lane.b32.xlu0 %v795, 64
        %v869 = vpop.permute.xlu0 %868
        %870 = vrot.lane.b32.xlu0 %v800, 64
        %v871 = vpop.permute.xlu0 %870
        %872 = vrot.lane.b32.xlu0 %v805, 64
        %v873 = vpop.permute.xlu0 %872
        %874 = vrot.lane.b32.xlu0 %v810, 64
        %v875 = vpop.permute.xlu0 %874
        %876 = vrot.lane.b32.xlu0 %v815, 64
        %v877 = vpop.permute.xlu0 %876
        %878 = vrot.lane.b32.xlu0 %v820, 64
        %v879 = vpop.permute.xlu0 %878
        %880 = vrot.lane.b32.xlu0 %v825, 64
        %v881 = vpop.permute.xlu0 %880
        %882 = vrot.lane.b32.xlu0 %v830, 64
        %v883 = vpop.permute.xlu0 %882
        %884 = vrot.lane.b32.xlu0 %v835, 64
        %v885 = vpop.permute.xlu0 %884
        %vm902 = vcmask 523264
        %v903 = vsel %vm902, %v565, %v855
        %v904 = vsel %vm902, %v570, %v857
        %v905 = vsel %vm902, %v575, %v859
        %v906 = vsel %vm902, %v580, %v861
        %v907 = vsel %vm902, %v585, %v863
        %v908 = vsel %vm902, %v590, %v865
        %v909 = vsel %vm902, %v595, %v867
        %v910 = vsel %vm902, %v600, %v869
        %v911 = vsel %vm902, %v605, %v871
        %v912 = vsel %vm902, %v610, %v873
        %v913 = vsel %vm902, %v615, %v875
        %v914 = vsel %vm902, %v620, %v877
        %v915 = vsel %vm902, %v625, %v879
        %v916 = vsel %vm902, %v630, %v881
        %v917 = vsel %vm902, %v635, %v883
        %v918 = vsel %vm902, %v640, %v885
        %919 = vst [vmem:[%s207] sm:$0xff] %v903
        %920 = vst [vmem:[%s207 + $0x8] sm:$0xff] %v904
        %921 = vst [vmem:[%s207 + $0x10] sm:$0xff] %v905
        %922 = vst [vmem:[%s207 + $0x18] sm:$0xff] %v906
        %923 = vst [vmem:[%s207 + $0x20] sm:$0xff] %v907
        %924 = vst [vmem:[%s207 + $0x28] sm:$0xff] %v908
        %925 = vst [vmem:[%s207 + $0x30] sm:$0xff] %v909
        %926 = vst [vmem:[%s207 + $0x38] sm:$0xff] %v910
        %927 = vst [vmem:[%s207 + $0x40] sm:$0xff] %v911
        %928 = vst [vmem:[%s207 + $0x48] sm:$0xff] %v912
        %929 = vst [vmem:[%s207 + $0x50] sm:$0xff] %v913
        %930 = vst [vmem:[%s207 + $0x58] sm:$0xff] %v914
        %931 = vst [vmem:[%s207 + $0x60] sm:$0xff] %v915
        %932 = vst [vmem:[%s207 + $0x68] sm:$0xff] %v916
        %933 = vst [vmem:[%s207 + $0x70] sm:$0xff] %v917
        %934 = vst [vmem:[%s207 + $0x78] sm:$0xff] %v918
        %s935 = sand.u32 %s120, 1
        %s936 = scalar_lea.sflag [#allocation3], %s935
        %s937 = sand.u32 %s120, 1
        %s938 = smul.addr %s937, 128
        %s939 = scalar_lea.vmem [#allocation2], %s938
        // Predicated region
        $region37: #{tpu_custom_call.1} parent=35 // pred_check
          %p940 = pneg %p130
        $region38: #{tpu_custom_call.1} parent=35 // pred_check_branch
          %942 = sbr.rel (%p940) target = $region40
        $region39: #{tpu_custom_call.1} parent=35 // pred_region
          %s943 = smul.u32 16, %s18
          %s945 = ssub.s32 2048, 2048
          %946 = vsyncadd %s936, %s945
          %s947 = smul.addr %s943, 128
          %s948 = scalar_lea.hbm %s4, %s947
          %s949 = sshll.u32 %s939, 4
          %s950 = int_to_ptr.vmem [resolvable:$true] %s949
          %955 = dma.vmem_to_hbm [thread:$0]  %s950, 2048, %s948, %s936, 128, 128, 8
        $region40: #{tpu_custom_call.1} parent=35 // pred_fallthru
          _
      $region36: #{tpu_custom_call.1} parent=5 // pred_fallthru
        _
      %p956 = scmp.le.s32.totalorder 2, %s13
      // Predicated region
      $region41: #{tpu_custom_call.1} parent=5 // pred_check
        %p957 = pneg %p956
      $region42: #{tpu_custom_call.1} parent=5 // pred_check_branch
        %959 = sbr.rel (%p957) target = $region44
      $region43: #{tpu_custom_call.1} parent=5 // pred_region
        %s960 = ssub.s32 %s13, 2
        // Predicated region
        $region45: #{tpu_custom_call.1} parent=43 // pred_check
          %p961 = pneg %p136
        $region46: #{tpu_custom_call.1} parent=43 // pred_check_branch
          %963 = sbr.rel (%p961) target = $region48
        $region47: #{tpu_custom_call.1} parent=43 // pred_region
          %s964 = sand.u32 %s121, 1
          %s965 = scalar_lea.sflag [#allocation3], %s964
          %s966 = sand.u32 %s121, 1
          %s967 = smul.addr %s966, 128
          %s968 = scalar_lea.vmem [#allocation2], %s967
          %969 = dma.done %s965, 2048
        $region48: #{tpu_custom_call.1} parent=43 // pred_fallthru
          _
      $region44: #{tpu_custom_call.1} parent=5 // pred_fallthru
        _
    $region6: #{tpu_custom_call.1} parent=1 // loop_footer
      %s17 = sadd.s32 1, %s13
    $region7: #{tpu_custom_call.1} parent=1 // loop_footer_branch
      %12 = sbr.rel target = $region3
    $region8: #{tpu_custom_call.1} parent=1 // loop_exit
      _
    %970 = vsyncpa [#allocation3], 1
    %s971 = scalar_lea.sflag [#allocation3], 1
    %972 = vsyncpa %s971, 1

</llo_original>
